<compile_context>
chip_gen: v7x
topology: tpu7x:2x2x1
jax: 0.10.0
libtpu: 0.0.40
codegen_flags: <defaults>
</compile_context>

<pallas_src>
import jax
import jax.numpy as jnp
from jax.experimental import pallas as pl
from jax.experimental.pallas import tpu as pltpu


def _round_up(n, m):
    return ((n + m - 1) // m) * m


def ae_kernel(x_ref, w1_ref, b1_ref, w23_ref, b23_ref, w4_ref, b4_ref, out_ref):
    # x tile: (TM, D) f32 -> cast to bf16 only for the MXU operand.
    x = x_ref[...].astype(jnp.bfloat16)

    # ---- encoder layer 1 ----
    h1 = jnp.dot(x, w1_ref[...], preferred_element_type=jnp.float32) + b1_ref[...]
    h1 = jnp.maximum(h1, 0.0)

    # ---- encoder layer 2 + identity bottleneck + decoder layer 1 (folded) ----
    h2 = jnp.dot(h1.astype(jnp.bfloat16), w23_ref[...],
                 preferred_element_type=jnp.float32) + b23_ref[...]
    h2 = jnp.maximum(h2, 0.0)

    # ---- decoder layer 2 ----
    y = jnp.dot(h2.astype(jnp.bfloat16), w4_ref[...],
                preferred_element_type=jnp.float32) + b4_ref[...]

    out_ref[...] = y.astype(out_ref.dtype)


def base_ae_forward(x_nchw, kernel_params):
    """BaseAE.forward: reconstruct NCHW input through the fused autoencoder."""
    B, C, H, W = x_nchw.shape
    D = C * H * W
    w1, b1, w23, b23, w4, b4 = kernel_params

    # Free metadata reshape; keep f32 (cast to bf16 happens in-kernel).
    x = x_nchw.reshape(B, D).astype(jnp.float32)

    # Batch tile: large enough to amortize per-step overhead, multiple of 8
    # sublanes (f32 input tile). Partial last block is masked by Pallas.
    TM = min(512, _round_up(B, 8))
    grid = (pl.cdiv(B, TM),)

    def resident(shape):
        # Full-array block with a constant index map -> stays in VMEM across steps.
        nd = len(shape)
        return pl.BlockSpec(shape, lambda i: (0,) * nd)

    recon = pl.pallas_call(
        ae_kernel,
        out_shape=jax.ShapeDtypeStruct((B, D), jnp.float32),
        grid=grid,
        in_specs=[
            pl.BlockSpec((TM, D), lambda i: (i, 0)),   # x tile streams over batch
            resident(w1.shape), resident(b1.shape),
            resident(w23.shape), resident(b23.shape),
            resident(w4.shape), resident(b4.shape),
        ],
        out_specs=pl.BlockSpec((TM, D), lambda i: (i, 0)),
        compiler_params=pltpu.CompilerParams(
            dimension_semantics=("parallel",),
            vmem_limit_bytes=32 << 20,
        ),
    )(x, w1, b1, w23, b23, w4, b4)

    return recon.reshape(B, C, H, W)


def init_params(key, d_in, hidden, latent, dtype=jnp.float32):
    """Original (unfolded) 4-layer parameters, f32."""
    ks = jax.random.split(key, 4)

    def lin(kw, fan_in, fan_out):
        scale = 1.0 / jnp.sqrt(jnp.float32(fan_in))
        return jax.random.uniform(kw, (fan_in, fan_out), dtype, -scale, scale)

    w1 = lin(ks[0], d_in, hidden);   b1 = jnp.zeros((1, hidden), dtype)
    w2 = lin(ks[1], hidden, latent); b2 = jnp.zeros((1, latent), dtype)
    w3 = lin(ks[2], latent, hidden); b3 = jnp.zeros((1, hidden), dtype)
    w4 = lin(ks[3], hidden, d_in);   b4 = jnp.zeros((1, d_in), dtype)
    return (w1, b1, w2, b2, w3, b3, w4, b4)


def fold_params(params):
    """Fold the two middle linears (valid only for the fully-open bottleneck)
    in f32, then cast matmul operands to bf16 (biases stay f32)."""
    w1, b1, w2, b2, w3, b3, w4, b4 = params
    w2f = w2.astype(jnp.float32)
    w3f = w3.astype(jnp.float32)
    w23 = w2f @ w3f
    b23 = b2.astype(jnp.float32) @ w3f + b3.astype(jnp.float32)
    return (w1.astype(jnp.bfloat16), b1.astype(jnp.float32),
            w23.astype(jnp.bfloat16), b23.astype(jnp.float32),
            w4.astype(jnp.bfloat16), b4.astype(jnp.float32))


def reference_forward(x_nchw, kernel_params):
    """Pure-JAX reference computing exactly the kernel's math (folded, bf16
    operands, f32 accumulation)."""
    B, C, H, W = x_nchw.shape
    w1, b1, w23, b23, w4, b4 = kernel_params
    x = x_nchw.reshape(B, C * H * W).astype(jnp.bfloat16)
    h1 = jnp.maximum(jnp.dot(x, w1, preferred_element_type=jnp.float32) + b1, 0.0)
    h2 = jnp.maximum(jnp.dot(h1.astype(jnp.bfloat16), w23,
                             preferred_element_type=jnp.float32) + b23, 0.0)
    y = jnp.dot(h2.astype(jnp.bfloat16), w4, preferred_element_type=jnp.float32) + b4
    return y.reshape(B, C, H, W)


def reference_forward_f32(x_nchw, params):
    """Original (unfolded, f32) BaseAE.forward — semantic reference."""
    B, C, H, W = x_nchw.shape
    x = x_nchw.reshape(B, C * H * W)
    w1, b1, w2, b2, w3, b3, w4, b4 = params
    h1 = jnp.maximum(x @ w1 + b1, 0.0)
    code = h1 @ w2 + b2                      # fully-open bottleneck: identity
    h2 = jnp.maximum(code @ w3 + b3, 0.0)
    y = h2 @ w4 + b4
    return y.reshape(B, C, H, W)


if __name__ == "__main__":
    B, C, H, W = 2, 4, 16, 16
    D_IN = C * H * W          # 1024
    HIDDEN = 128
    LATENT = 32               # bottleneck.num_features

    key = jax.random.PRNGKey(0)
    kx, kp = jax.random.split(key)
    x = jax.random.normal(kx, (B, C, H, W), jnp.float32)

    params = init_params(kp, D_IN, HIDDEN, LATENT)
    kparams = fold_params(params)

    out = base_ae_forward(x, kparams)
    out = jax.block_until_ready(out)

    assert out.shape == (B, C, H, W)

    # Exact-math check (same folded bf16 computation in plain JAX).
    ref = reference_forward(x, kparams)
    assert jnp.allclose(out, ref, atol=1e-3, rtol=1e-3), "mismatch vs bf16 reference"

    # Semantic check against the original unfolded f32 forward (bf16/fold tolerance).
    ref_f32 = reference_forward_f32(x, params)
    assert jnp.allclose(out, ref_f32, atol=5e-2, rtol=5e-2), "mismatch vs f32 reference"

    print("KERNEL_OK")
</pallas_src>

<mosaic_0001>
module attributes {stable_mosaic.version = 11 : i64} {
  func.func @ae_kernel(%arg0: i32, %arg1: memref<8x1024xf32, #tpu.memory_space<vmem>>, %arg2: memref<1024x128xbf16, #tpu.memory_space<vmem>>, %arg3: memref<1x128xf32, #tpu.memory_space<vmem>>, %arg4: memref<128x128xbf16, #tpu.memory_space<vmem>>, %arg5: memref<1x128xf32, #tpu.memory_space<vmem>>, %arg6: memref<128x1024xbf16, #tpu.memory_space<vmem>>, %arg7: memref<1x1024xf32, #tpu.memory_space<vmem>>, %arg8: memref<8x1024xf32, #tpu.memory_space<vmem>>) attributes {dimension_semantics = [#tpu.dimension_semantics<parallel>], iteration_bounds = array<i64: 1>, scalar_prefetch = 0 : i64, scratch_operands = 0 : i64, tpu.core_type = #tpu.core_type<tc>, window_params = [{transform_indices = @transform_0, window_bounds = array<i64: 8, 1024>}, {pipeline_mode = #tpu.pipeline_mode<synchronous>, transform_indices = @transform_1, window_bounds = array<i64: 1024, 128>}, {pipeline_mode = #tpu.pipeline_mode<synchronous>, transform_indices = @transform_2, window_bounds = array<i64: 1, 128>}, {pipeline_mode = #tpu.pipeline_mode<synchronous>, transform_indices = @transform_3, window_bounds = array<i64: 128, 128>}, {pipeline_mode = #tpu.pipeline_mode<synchronous>, transform_indices = @transform_4, window_bounds = array<i64: 1, 128>}, {pipeline_mode = #tpu.pipeline_mode<synchronous>, transform_indices = @transform_5, window_bounds = array<i64: 128, 1024>}, {pipeline_mode = #tpu.pipeline_mode<synchronous>, transform_indices = @transform_6, window_bounds = array<i64: 1, 1024>}, {transform_indices = @transform_7, window_bounds = array<i64: 8, 1024>}]} {
    %c0 = arith.constant 0 : index
    %c0_0 = arith.constant 0 : index
    %0 = vector.load %arg1[%c0, %c0_0] : memref<8x1024xf32, #tpu.memory_space<vmem>>, vector<8x1024xf32>
    %1 = arith.truncf %0 : vector<8x1024xf32> to vector<8x1024xbf16>
    %c0_1 = arith.constant 0 : index
    %c0_2 = arith.constant 0 : index
    %2 = vector.load %arg2[%c0_1, %c0_2] : memref<1024x128xbf16, #tpu.memory_space<vmem>>, vector<1024x128xbf16>
    %cst = arith.constant dense<0.000000e+00> : vector<8x128xf32>
    %3 = tpu.matmul %1, %2, %cst {dimension_numbers = #tpu.dot_dimension_numbers<[1], [0], [0], [1], [0, 0, 1, 1], [], []>} : vector<8x1024xbf16>, vector<1024x128xbf16>, vector<8x128xf32> -> vector<8x128xf32>
    %c0_3 = arith.constant 0 : index
    %c0_4 = arith.constant 0 : index
    %4 = vector.load %arg3[%c0_3, %c0_4] : memref<1x128xf32, #tpu.memory_space<vmem>>, vector<1x128xf32>
    %5 = vector.broadcast %4 : vector<1x128xf32> to vector<8x128xf32>
    %6 = arith.addf %3, %5 : vector<8x128xf32>
    %cst_5 = arith.constant 0.000000e+00 : f32
    %7 = vector.broadcast %cst_5 : f32 to vector<8x128xf32>
    %8 = arith.maximumf %6, %7 : vector<8x128xf32>
    %9 = arith.truncf %8 : vector<8x128xf32> to vector<8x128xbf16>
    %c0_6 = arith.constant 0 : index
    %c0_7 = arith.constant 0 : index
    %10 = vector.load %arg4[%c0_6, %c0_7] : memref<128x128xbf16, #tpu.memory_space<vmem>>, vector<128x128xbf16>
    %cst_8 = arith.constant dense<0.000000e+00> : vector<8x128xf32>
    %11 = tpu.matmul %9, %10, %cst_8 {dimension_numbers = #tpu.dot_dimension_numbers<[1], [0], [0], [1], [0, 0, 1, 1], [], []>} : vector<8x128xbf16>, vector<128x128xbf16>, vector<8x128xf32> -> vector<8x128xf32>
    %c0_9 = arith.constant 0 : index
    %c0_10 = arith.constant 0 : index
    %12 = vector.load %arg5[%c0_9, %c0_10] : memref<1x128xf32, #tpu.memory_space<vmem>>, vector<1x128xf32>
    %13 = vector.broadcast %12 : vector<1x128xf32> to vector<8x128xf32>
    %14 = arith.addf %11, %13 : vector<8x128xf32>
    %cst_11 = arith.constant 0.000000e+00 : f32
    %15 = vector.broadcast %cst_11 : f32 to vector<8x128xf32>
    %16 = arith.maximumf %14, %15 : vector<8x128xf32>
    %17 = arith.truncf %16 : vector<8x128xf32> to vector<8x128xbf16>
    %c0_12 = arith.constant 0 : index
    %c0_13 = arith.constant 0 : index
    %18 = vector.load %arg6[%c0_12, %c0_13] : memref<128x1024xbf16, #tpu.memory_space<vmem>>, vector<128x1024xbf16>
    %cst_14 = arith.constant dense<0.000000e+00> : vector<8x1024xf32>
    %19 = tpu.matmul %17, %18, %cst_14 {dimension_numbers = #tpu.dot_dimension_numbers<[1], [0], [0], [1], [0, 0, 1, 1], [], []>} : vector<8x128xbf16>, vector<128x1024xbf16>, vector<8x1024xf32> -> vector<8x1024xf32>
    %c0_15 = arith.constant 0 : index
    %c0_16 = arith.constant 0 : index
    %20 = vector.load %arg7[%c0_15, %c0_16] : memref<1x1024xf32, #tpu.memory_space<vmem>>, vector<1x1024xf32>
    %21 = vector.broadcast %20 : vector<1x1024xf32> to vector<8x1024xf32>
    %22 = arith.addf %19, %21 : vector<8x1024xf32>
    %c0_17 = arith.constant 0 : index
    %c0_18 = arith.constant 0 : index
    %23 = vector.load %arg8[%c0_17, %c0_18] : memref<8x1024xf32, #tpu.memory_space<vmem>>, vector<8x1024xf32>
    tpu.vector_store %arg8[%c0_17, %c0_18], %22 {strides = array<i32>} : memref<8x1024xf32, #tpu.memory_space<vmem>>, vector<8x1024xf32>,
    return
  }
  func.func @transform_0(%arg0: i32) -> (i32, i32) {
    %c0_i32 = arith.constant 0 : i32
    %c0_i32_0 = arith.constant 0 : i32
    return %arg0, %c0_i32 : i32, i32
  }
  func.func @transform_1(%arg0: i32) -> (i32, i32) {
    %c0_i32 = arith.constant 0 : i32
    %c0_i32_0 = arith.constant 0 : i32
    %c0_i32_1 = arith.constant 0 : i32
    return %c0_i32, %c0_i32_0 : i32, i32
  }
  func.func @transform_2(%arg0: i32) -> (i32, i32) {
    %c0_i32 = arith.constant 0 : i32
    %c0_i32_0 = arith.constant 0 : i32
    %c0_i32_1 = arith.constant 0 : i32
    return %c0_i32, %c0_i32_0 : i32, i32
  }
  func.func @transform_3(%arg0: i32) -> (i32, i32) {
    %c0_i32 = arith.constant 0 : i32
    %c0_i32_0 = arith.constant 0 : i32
    %c0_i32_1 = arith.constant 0 : i32
    return %c0_i32, %c0_i32_0 : i32, i32
  }
  func.func @transform_4(%arg0: i32) -> (i32, i32) {
    %c0_i32 = arith.constant 0 : i32
    %c0_i32_0 = arith.constant 0 : i32
    %c0_i32_1 = arith.constant 0 : i32
    return %c0_i32, %c0_i32_0 : i32, i32
  }
  func.func @transform_5(%arg0: i32) -> (i32, i32) {
    %c0_i32 = arith.constant 0 : i32
    %c0_i32_0 = arith.constant 0 : i32
    %c0_i32_1 = arith.constant 0 : i32
    return %c0_i32, %c0_i32_0 : i32, i32
  }
  func.func @transform_6(%arg0: i32) -> (i32, i32) {
    %c0_i32 = arith.constant 0 : i32
    %c0_i32_0 = arith.constant 0 : i32
    %c0_i32_1 = arith.constant 0 : i32
    return %c0_i32, %c0_i32_0 : i32, i32
  }
  func.func @transform_7(%arg0: i32) -> (i32, i32) {
    %c0_i32 = arith.constant 0 : i32
    %c0_i32_0 = arith.constant 0 : i32
    return %arg0, %c0_i32 : i32, i32
  }
}

</mosaic_0001>

<llo_original>
// kernel: tpu_custom_call.1
$region0: #{tpu_custom_call.1}
  #allocation0 [shape = 'u32[]', space=smem, size = 0x4, offset = 0x4, fixed_abs, tag = 'smem constant byte address 0x4 - core index']
  #allocation1 [shape = 'u32[144,128]{1,0:T(1,128)}', space=vmem, size = 0x12000, scoped, tag = 'internal scratch']
  %s0 = inlined_call_operand.hbm [shape: f32[2,1024], index: 0, kind: input, shape index: {}]
  %s1 = inlined_call_operand.hbm [shape: bf16[1024,128], index: 1, kind: input, shape index: {}]
  %s2 = inlined_call_operand.vmem [shape: f32[1,128], index: 2, kind: input, shape index: {}]
  %s3 = inlined_call_operand.hbm [shape: bf16[128,128], index: 3, kind: input, shape index: {}]
  %s4 = inlined_call_operand.vmem [shape: f32[1,128], index: 4, kind: input, shape index: {}]
  %s5 = inlined_call_operand.hbm [shape: bf16[128,1024], index: 5, kind: input, shape index: {}]
  %s6 = inlined_call_operand.vmem [shape: f32[1,1024], index: 6, kind: input, shape index: {}]
  %s7 = inlined_call_operand.hbm [shape: f32[2,1024], index: 7, kind: output, shape index: {}]
  %s8 = sld [smem:[#allocation0]]
  $region54: #{tpu_custom_call.1} parent=0
    _
  %s10 = ssub.s32 1, %s8
  %s11 = scalar_select 0, %s10, %s8
  $region1: #{tpu_custom_call.1} parent=0
    #allocation2 [shape = 'u8[32768]{0}', space=vmem, size = 0x8000, scoped, tag = 'input window, operand 0, single buffered']
    #allocation3 [shape = 's32[1]{0}', space=sflag, size = 0x4, scoped, tag = 'scoped memory for tpu_custom_call.1']
    #allocation4 [shape = 's32[1]{0}', space=sflag, size = 0x4, scoped, tag = 'scoped memory for tpu_custom_call.1']
    #allocation5 [shape = 'u8[262144]{0}', space=vmem, size = 0x40000, scoped, tag = 'input window, operand 1, single buffered']
    #allocation6 [shape = 's32[1]{0}', space=sflag, size = 0x4, scoped, tag = 'scoped memory for tpu_custom_call.1']
    #allocation7 [shape = 'u8[32768]{0}', space=vmem, size = 0x8000, scoped, tag = 'input window, operand 3, single buffered']
    #allocation8 [shape = 'u8[262144]{0}', space=vmem, size = 0x40000, scoped, tag = 'input window, operand 5, single buffered']
    #allocation9 [shape = 's32[1]{0}', space=sflag, size = 0x4, scoped, tag = 'scoped memory for tpu_custom_call.1']
    #allocation10 [shape = 'u8[32768]{0}', space=vmem, size = 0x8000, scoped, tag = 'output window, operand 0, single buffered']
    %12 = vsyncpa [#allocation3], 0
    %13 = vsyncpa [#allocation6], 0
    %14 = vsyncpa [#allocation9], 0
    %15 = vsyncpa [#allocation4], 0
    // Predicated region
    $region2: #{tpu_custom_call.1} parent=1 // pred_check
      _
    $region3: #{tpu_custom_call.1} parent=1 // pred_check_branch
      %17 = sbr.rel (0) target = $region5
    $region4: #{tpu_custom_call.1} parent=1 // pred_region
      %s19 = ssub.s32 1024, 256
      %20 = vsyncadd [#allocation3], %s19
      %s21 = sshll.u32 [#allocation2], 4
      %s22 = int_to_ptr.vmem [resolvable:$true] %s21
      %27 = dma.hbm_to_vmem [thread:$0]  %s0, 256, %s22, [#allocation3], 256, 256, 16
    $region5: #{tpu_custom_call.1} parent=1 // pred_fallthru
      _
    // Predicated region
    $region6: #{tpu_custom_call.1} parent=1 // pred_check
      _
    $region7: #{tpu_custom_call.1} parent=1 // pred_check_branch
      %29 = sbr.rel (0) target = $region9
    $region8: #{tpu_custom_call.1} parent=1 // pred_region
      %s31 = ssub.s32 8192, 8192
      %32 = vsyncadd [#allocation6], %s31
      %s33 = sshll.u32 [#allocation5], 4
      %s34 = int_to_ptr.vmem [resolvable:$true] %s33
      %39 = dma.hbm_to_vmem [thread:$0]  %s1, 8192, %s34, [#allocation6], 64, 64, 4
    $region9: #{tpu_custom_call.1} parent=1 // pred_fallthru
      _
    // Predicated region
    $region10: #{tpu_custom_call.1} parent=1 // pred_check
      _
    $region11: #{tpu_custom_call.1} parent=1 // pred_check_branch
      %41 = sbr.rel (0) target = $region13
    $region12: #{tpu_custom_call.1} parent=1 // pred_region
      _
    $region13: #{tpu_custom_call.1} parent=1 // pred_fallthru
      _
    // Predicated region
    $region14: #{tpu_custom_call.1} parent=1 // pred_check
      _
    $region15: #{tpu_custom_call.1} parent=1 // pred_check_branch
      %43 = sbr.rel (0) target = $region17
    $region16: #{tpu_custom_call.1} parent=1 // pred_region
      %s45 = ssub.s32 1024, 1024
      %46 = vsyncadd [#allocation6], %s45
      %s47 = sshll.u32 [#allocation7], 4
      %s48 = int_to_ptr.vmem [resolvable:$true] %s47
      %53 = dma.hbm_to_vmem [thread:$0]  %s3, 1024, %s48, [#allocation6], 64, 64, 4
    $region17: #{tpu_custom_call.1} parent=1 // pred_fallthru
      _
    // Predicated region
    $region18: #{tpu_custom_call.1} parent=1 // pred_check
      _
    $region19: #{tpu_custom_call.1} parent=1 // pred_check_branch
      %55 = sbr.rel (0) target = $region21
    $region20: #{tpu_custom_call.1} parent=1 // pred_region
      _
    $region21: #{tpu_custom_call.1} parent=1 // pred_fallthru
      _
    // Predicated region
    $region22: #{tpu_custom_call.1} parent=1 // pred_check
      _
    $region23: #{tpu_custom_call.1} parent=1 // pred_check_branch
      %57 = sbr.rel (0) target = $region25
    $region24: #{tpu_custom_call.1} parent=1 // pred_region
      %s59 = ssub.s32 8192, 8192
      %60 = vsyncadd [#allocation9], %s59
      %s61 = sshll.u32 [#allocation8], 4
      %s62 = int_to_ptr.vmem [resolvable:$true] %s61
      %67 = dma.hbm_to_vmem [thread:$0]  %s5, 8192, %s62, [#allocation9], 512, 512, 32
    $region25: #{tpu_custom_call.1} parent=1 // pred_fallthru
      _
    // Predicated region
    $region26: #{tpu_custom_call.1} parent=1 // pred_check
      _
    $region27: #{tpu_custom_call.1} parent=1 // pred_check_branch
      %69 = sbr.rel (0) target = $region29
    $region28: #{tpu_custom_call.1} parent=1 // pred_region
      _
    $region29: #{tpu_custom_call.1} parent=1 // pred_fallthru
      _
    // Predicated region
    $region30: #{tpu_custom_call.1} parent=1 // pred_check
      _
    $region31: #{tpu_custom_call.1} parent=1 // pred_check_branch
      %71 = sbr.rel (0) target = $region33
    $region32: #{tpu_custom_call.1} parent=1 // pred_region
      %72 = dma.done [#allocation3], 1024
    $region33: #{tpu_custom_call.1} parent=1 // pred_fallthru
      _
    // Predicated region
    $region34: #{tpu_custom_call.1} parent=1 // pred_check
      _
    $region35: #{tpu_custom_call.1} parent=1 // pred_check_branch
      %74 = sbr.rel (0) target = $region37
    $region36: #{tpu_custom_call.1} parent=1 // pred_region
      %75 = dma.done [#allocation6], 8192
    $region37: #{tpu_custom_call.1} parent=1 // pred_fallthru
      _
    // Predicated region
    $region38: #{tpu_custom_call.1} parent=1 // pred_check
      _
    $region39: #{tpu_custom_call.1} parent=1 // pred_check_branch
      %77 = sbr.rel (0) target = $region41
    $region40: #{tpu_custom_call.1} parent=1 // pred_region
      %78 = dma.done [#allocation6], 1024
    $region41: #{tpu_custom_call.1} parent=1 // pred_fallthru
      _
    // Predicated region
    $region42: #{tpu_custom_call.1} parent=1 // pred_check
      _
    $region43: #{tpu_custom_call.1} parent=1 // pred_check_branch
      %80 = sbr.rel (0) target = $region45
    $region44: #{tpu_custom_call.1} parent=1 // pred_region
      %81 = dma.done [#allocation9], 8192
    $region45: #{tpu_custom_call.1} parent=1 // pred_fallthru
      _
    %v83 = vld [vmem:[#allocation2] sm:$0xff]
    %v84 = vld [vmem:[#allocation2 + $0x8] sm:$0xff]
    %v85 = vld [vmem:[#allocation2 + $0x10] sm:$0xff]
    %v86 = vld [vmem:[#allocation2 + $0x18] sm:$0xff]
    %v87 = vld [vmem:[#allocation2 + $0x20] sm:$0xff]
    %v88 = vld [vmem:[#allocation2 + $0x28] sm:$0xff]
    %v89 = vld [vmem:[#allocation2 + $0x30] sm:$0xff]
    %v90 = vld [vmem:[#allocation2 + $0x38] sm:$0xff]
    %v99 = vcombine.low %v83, %v85
    %v100 = vcombine.high %v83, %v85
    %v101 = vcombine.low %v87, %v89
    %v102 = vcombine.high %v87, %v89
    %v104 = vunpack.c.l.s4 1983009808
    %v105 = vunpack.c.0.s8 %v104
    %v106 = vlaneseq
    %v107 = vshrl.u32 %v106, 7
    %v108 = vsub.s32 %v105, %v107
    %v109 = vrot.slane %v99, %v108
    %v111 = vunpack.c.l.s4 1983009808
    %v112 = vunpack.c.0.s8 %v111
    %v113 = vlaneseq
    %v114 = vshrl.u32 %v113, 7
    %v115 = vsub.s32 %v112, %v114
    %v116 = vrot.slane %v100, %v115
    %v118 = vunpack.c.l.s4 1983009808
    %v119 = vunpack.c.0.s8 %v118
    %v120 = vlaneseq
    %v121 = vshrl.u32 %v120, 7
    %v122 = vsub.s32 %v119, %v121
    %v123 = vrot.slane %v101, %v122
    %v125 = vunpack.c.l.s4 1983009808
    %v126 = vunpack.c.0.s8 %v125
    %v127 = vlaneseq
    %v128 = vshrl.u32 %v127, 7
    %v129 = vsub.s32 %v126, %v128
    %v130 = vrot.slane %v102, %v129
    %v131 = vcombine.low %v109, %v123
    %v132 = vcombine.high %v109, %v123
    %v133 = vcombine.low %v116, %v130
    %v134 = vcombine.high %v116, %v130
    %v135 = vcombine.low %v84, %v86
    %v136 = vcombine.high %v84, %v86
    %v137 = vcombine.low %v88, %v90
    %v138 = vcombine.high %v88, %v90
    %v140 = vunpack.c.l.s4 1983009808
    %v141 = vunpack.c.0.s8 %v140
    %v142 = vlaneseq
    %v143 = vshrl.u32 %v142, 7
    %v144 = vsub.s32 %v141, %v143
    %v145 = vrot.slane %v135, %v144
    %v147 = vunpack.c.l.s4 1983009808
    %v148 = vunpack.c.0.s8 %v147
    %v149 = vlaneseq
    %v150 = vshrl.u32 %v149, 7
    %v151 = vsub.s32 %v148, %v150
    %v152 = vrot.slane %v136, %v151
    %v154 = vunpack.c.l.s4 1983009808
    %v155 = vunpack.c.0.s8 %v154
    %v156 = vlaneseq
    %v157 = vshrl.u32 %v156, 7
    %v158 = vsub.s32 %v155, %v157
    %v159 = vrot.slane %v137, %v158
    %v161 = vunpack.c.l.s4 1983009808
    %v162 = vunpack.c.0.s8 %v161
    %v163 = vlaneseq
    %v164 = vshrl.u32 %v163, 7
    %v165 = vsub.s32 %v162, %v164
    %v166 = vrot.slane %v138, %v165
    %v167 = vcombine.low %v145, %v159
    %v168 = vcombine.high %v145, %v159
    %v169 = vcombine.low %v152, %v166
    %v170 = vcombine.high %v152, %v166
    %v179 = vpack.c.bf16 %v131, %v131
    %v180 = vpack.c.bf16 %v132, %v132
    %v181 = vpack.c.bf16 %v133, %v133
    %v182 = vpack.c.bf16 %v134, %v134
    %v183 = vpack.c.bf16 %v167, %v167
    %v184 = vpack.c.bf16 %v168, %v168
    %v185 = vpack.c.bf16 %v169, %v169
    %v186 = vpack.c.bf16 %v170, %v170
    %v187 = vld [vmem:[#allocation5] sm:$0xf]
    %v188 = vld [vmem:[#allocation5 + $0x4] sm:$0xf]
    %v189 = vld [vmem:[#allocation5 + $0x8] sm:$0xf]
    %v190 = vld [vmem:[#allocation5 + $0xc] sm:$0xf]
    %v191 = vld [vmem:[#allocation5 + $0x10] sm:$0xf]
    %v192 = vld [vmem:[#allocation5 + $0x14] sm:$0xf]
    %v193 = vld [vmem:[#allocation5 + $0x18] sm:$0xf]
    %v194 = vld [vmem:[#allocation5 + $0x1c] sm:$0xf]
    %v195 = vld [vmem:[#allocation5 + $0x20] sm:$0xf]
    %v196 = vld [vmem:[#allocation5 + $0x24] sm:$0xf]
    %v197 = vld [vmem:[#allocation5 + $0x28] sm:$0xf]
    %v198 = vld [vmem:[#allocation5 + $0x2c] sm:$0xf]
    %v199 = vld [vmem:[#allocation5 + $0x30] sm:$0xf]
    %v200 = vld [vmem:[#allocation5 + $0x34] sm:$0xf]
    %v201 = vld [vmem:[#allocation5 + $0x38] sm:$0xf]
    %v202 = vld [vmem:[#allocation5 + $0x3c] sm:$0xf]
    %v203 = vld [vmem:[#allocation5 + $0x40] sm:$0xf]
    %v204 = vld [vmem:[#allocation5 + $0x44] sm:$0xf]
    %v205 = vld [vmem:[#allocation5 + $0x48] sm:$0xf]
    %v206 = vld [vmem:[#allocation5 + $0x4c] sm:$0xf]
    %v207 = vld [vmem:[#allocation5 + $0x50] sm:$0xf]
    %v208 = vld [vmem:[#allocation5 + $0x54] sm:$0xf]
    %v209 = vld [vmem:[#allocation5 + $0x58] sm:$0xf]
    %v210 = vld [vmem:[#allocation5 + $0x5c] sm:$0xf]
    %v211 = vld [vmem:[#allocation5 + $0x60] sm:$0xf]
    %v212 = vld [vmem:[#allocation5 + $0x64] sm:$0xf]
    %v213 = vld [vmem:[#allocation5 + $0x68] sm:$0xf]
    %v214 = vld [vmem:[#allocation5 + $0x6c] sm:$0xf]
    %v215 = vld [vmem:[#allocation5 + $0x70] sm:$0xf]
    %v216 = vld [vmem:[#allocation5 + $0x74] sm:$0xf]
    %v217 = vld [vmem:[#allocation5 + $0x78] sm:$0xf]
    %v218 = vld [vmem:[#allocation5 + $0x7c] sm:$0xf]
    %v219 = vld [vmem:[#allocation5 + $0x80] sm:$0xf]
    %v220 = vld [vmem:[#allocation5 + $0x84] sm:$0xf]
    %v221 = vld [vmem:[#allocation5 + $0x88] sm:$0xf]
    %v222 = vld [vmem:[#allocation5 + $0x8c] sm:$0xf]
    %v223 = vld [vmem:[#allocation5 + $0x90] sm:$0xf]
    %v224 = vld [vmem:[#allocation5 + $0x94] sm:$0xf]
    %v225 = vld [vmem:[#allocation5 + $0x98] sm:$0xf]
    %v226 = vld [vmem:[#allocation5 + $0x9c] sm:$0xf]
    %v227 = vld [vmem:[#allocation5 + $0xa0] sm:$0xf]
    %v228 = vld [vmem:[#allocation5 + $0xa4] sm:$0xf]
    %v229 = vld [vmem:[#allocation5 + $0xa8] sm:$0xf]
    %v230 = vld [vmem:[#allocation5 + $0xac] sm:$0xf]
    %v231 = vld [vmem:[#allocation5 + $0xb0] sm:$0xf]
    %v232 = vld [vmem:[#allocation5 + $0xb4] sm:$0xf]
    %v233 = vld [vmem:[#allocation5 + $0xb8] sm:$0xf]
    %v234 = vld [vmem:[#allocation5 + $0xbc] sm:$0xf]
    %v235 = vld [vmem:[#allocation5 + $0xc0] sm:$0xf]
    %v236 = vld [vmem:[#allocation5 + $0xc4] sm:$0xf]
    %v237 = vld [vmem:[#allocation5 + $0xc8] sm:$0xf]
    %v238 = vld [vmem:[#allocation5 + $0xcc] sm:$0xf]
    %v239 = vld [vmem:[#allocation5 + $0xd0] sm:$0xf]
    %v240 = vld [vmem:[#allocation5 + $0xd4] sm:$0xf]
    %v241 = vld [vmem:[#allocation5 + $0xd8] sm:$0xf]
    %v242 = vld [vmem:[#allocation5 + $0xdc] sm:$0xf]
    %v243 = vld [vmem:[#allocation5 + $0xe0] sm:$0xf]
    %v244 = vld [vmem:[#allocation5 + $0xe4] sm:$0xf]
    %v245 = vld [vmem:[#allocation5 + $0xe8] sm:$0xf]
    %v246 = vld [vmem:[#allocation5 + $0xec] sm:$0xf]
    %v247 = vld [vmem:[#allocation5 + $0xf0] sm:$0xf]
    %v248 = vld [vmem:[#allocation5 + $0xf4] sm:$0xf]
    %v249 = vld [vmem:[#allocation5 + $0xf8] sm:$0xf]
    %v250 = vld [vmem:[#allocation5 + $0xfc] sm:$0xf]
    %v251 = vld [vmem:[#allocation5 + $0x100] sm:$0xf]
    %v252 = vld [vmem:[#allocation5 + $0x104] sm:$0xf]
    %v253 = vld [vmem:[#allocation5 + $0x108] sm:$0xf]
    %v254 = vld [vmem:[#allocation5 + $0x10c] sm:$0xf]
    %v255 = vld [vmem:[#allocation5 + $0x110] sm:$0xf]
    %v256 = vld [vmem:[#allocation5 + $0x114] sm:$0xf]
    %v257 = vld [vmem:[#allocation5 + $0x118] sm:$0xf]
    %v258 = vld [vmem:[#allocation5 + $0x11c] sm:$0xf]
    %v259 = vld [vmem:[#allocation5 + $0x120] sm:$0xf]
    %v260 = vld [vmem:[#allocation5 + $0x124] sm:$0xf]
    %v261 = vld [vmem:[#allocation5 + $0x128] sm:$0xf]
    %v262 = vld [vmem:[#allocation5 + $0x12c] sm:$0xf]
    %v263 = vld [vmem:[#allocation5 + $0x130] sm:$0xf]
    %v264 = vld [vmem:[#allocation5 + $0x134] sm:$0xf]
    %v265 = vld [vmem:[#allocation5 + $0x138] sm:$0xf]
    %v266 = vld [vmem:[#allocation5 + $0x13c] sm:$0xf]
    %v267 = vld [vmem:[#allocation5 + $0x140] sm:$0xf]
    %v268 = vld [vmem:[#allocation5 + $0x144] sm:$0xf]
    %v269 = vld [vmem:[#allocation5 + $0x148] sm:$0xf]
    %v270 = vld [vmem:[#allocation5 + $0x14c] sm:$0xf]
    %v271 = vld [vmem:[#allocation5 + $0x150] sm:$0xf]
    %v272 = vld [vmem:[#allocation5 + $0x154] sm:$0xf]
    %v273 = vld [vmem:[#allocation5 + $0x158] sm:$0xf]
    %v274 = vld [vmem:[#allocation5 + $0x15c] sm:$0xf]
    %v275 = vld [vmem:[#allocation5 + $0x160] sm:$0xf]
    %v276 = vld [vmem:[#allocation5 + $0x164] sm:$0xf]
    %v277 = vld [vmem:[#allocation5 + $0x168] sm:$0xf]
    %v278 = vld [vmem:[#allocation5 + $0x16c] sm:$0xf]
    %v279 = vld [vmem:[#allocation5 + $0x170] sm:$0xf]
    %v280 = vld [vmem:[#allocation5 + $0x174] sm:$0xf]
    %v281 = vld [vmem:[#allocation5 + $0x178] sm:$0xf]
    %v282 = vld [vmem:[#allocation5 + $0x17c] sm:$0xf]
    %v283 = vld [vmem:[#allocation5 + $0x180] sm:$0xf]
    %v284 = vld [vmem:[#allocation5 + $0x184] sm:$0xf]
    %v285 = vld [vmem:[#allocation5 + $0x188] sm:$0xf]
    %v286 = vld [vmem:[#allocation5 + $0x18c] sm:$0xf]
    %v287 = vld [vmem:[#allocation5 + $0x190] sm:$0xf]
    %v288 = vld [vmem:[#allocation5 + $0x194] sm:$0xf]
    %v289 = vld [vmem:[#allocation5 + $0x198] sm:$0xf]
    %v290 = vld [vmem:[#allocation5 + $0x19c] sm:$0xf]
    %v291 = vld [vmem:[#allocation5 + $0x1a0] sm:$0xf]
    %v292 = vld [vmem:[#allocation5 + $0x1a4] sm:$0xf]
    %v293 = vld [vmem:[#allocation5 + $0x1a8] sm:$0xf]
    %v294 = vld [vmem:[#allocation5 + $0x1ac] sm:$0xf]
    %v295 = vld [vmem:[#allocation5 + $0x1b0] sm:$0xf]
    %v296 = vld [vmem:[#allocation5 + $0x1b4] sm:$0xf]
    %v297 = vld [vmem:[#allocation5 + $0x1b8] sm:$0xf]
    %v298 = vld [vmem:[#allocation5 + $0x1bc] sm:$0xf]
    %v299 = vld [vmem:[#allocation5 + $0x1c0] sm:$0xf]
    %v300 = vld [vmem:[#allocation5 + $0x1c4] sm:$0xf]
    %v301 = vld [vmem:[#allocation5 + $0x1c8] sm:$0xf]
    %v302 = vld [vmem:[#allocation5 + $0x1cc] sm:$0xf]
    %v303 = vld [vmem:[#allocation5 + $0x1d0] sm:$0xf]
    %v304 = vld [vmem:[#allocation5 + $0x1d4] sm:$0xf]
    %v305 = vld [vmem:[#allocation5 + $0x1d8] sm:$0xf]
    %v306 = vld [vmem:[#allocation5 + $0x1dc] sm:$0xf]
    %v307 = vld [vmem:[#allocation5 + $0x1e0] sm:$0xf]
    %v308 = vld [vmem:[#allocation5 + $0x1e4] sm:$0xf]
    %v309 = vld [vmem:[#allocation5 + $0x1e8] sm:$0xf]
    %v310 = vld [vmem:[#allocation5 + $0x1ec] sm:$0xf]
    %v311 = vld [vmem:[#allocation5 + $0x1f0] sm:$0xf]
    %v312 = vld [vmem:[#allocation5 + $0x1f4] sm:$0xf]
    %v313 = vld [vmem:[#allocation5 + $0x1f8] sm:$0xf]
    %v314 = vld [vmem:[#allocation5 + $0x1fc] sm:$0xf]
    %v315 = vld [vmem:[%s2] sm:$0x1]
    %v317 = vlaneseq
    %v318 = vshrl.u32 %v317, 7
    %v319 = vsub.s32 0, %v318
    %v320 = vrot.slane %v315, %v319
    %v450 = vunpack.c.l.b16 %v187
    %v451 = vunpack.c.l.b16 %v188
    %v452 = vunpack.c.l.b16 %v189
    %v453 = vunpack.c.l.b16 %v190
    %v454 = vunpack.c.l.b16 %v191
    %v455 = vunpack.c.l.b16 %v192
    %v456 = vunpack.c.l.b16 %v193
    %v457 = vunpack.c.l.b16 %v194
    %v458 = vunpack.c.l.b16 %v195
    %v459 = vunpack.c.l.b16 %v196
    %v460 = vunpack.c.l.b16 %v197
    %v461 = vunpack.c.l.b16 %v198
    %v462 = vunpack.c.l.b16 %v199
    %v463 = vunpack.c.l.b16 %v200
    %v464 = vunpack.c.l.b16 %v201
    %v465 = vunpack.c.l.b16 %v202
    %v466 = vunpack.c.l.b16 %v203
    %v467 = vunpack.c.l.b16 %v204
    %v468 = vunpack.c.l.b16 %v205
    %v469 = vunpack.c.l.b16 %v206
    %v470 = vunpack.c.l.b16 %v207
    %v471 = vunpack.c.l.b16 %v208
    %v472 = vunpack.c.l.b16 %v209
    %v473 = vunpack.c.l.b16 %v210
    %v474 = vunpack.c.l.b16 %v211
    %v475 = vunpack.c.l.b16 %v212
    %v476 = vunpack.c.l.b16 %v213
    %v477 = vunpack.c.l.b16 %v214
    %v478 = vunpack.c.l.b16 %v215
    %v479 = vunpack.c.l.b16 %v216
    %v480 = vunpack.c.l.b16 %v217
    %v481 = vunpack.c.l.b16 %v218
    %v482 = vunpack.c.l.b16 %v219
    %v483 = vunpack.c.l.b16 %v220
    %v484 = vunpack.c.l.b16 %v221
    %v485 = vunpack.c.l.b16 %v222
    %v486 = vunpack.c.l.b16 %v223
    %v487 = vunpack.c.l.b16 %v224
    %v488 = vunpack.c.l.b16 %v225
    %v489 = vunpack.c.l.b16 %v226
    %v490 = vunpack.c.l.b16 %v227
    %v491 = vunpack.c.l.b16 %v228
    %v492 = vunpack.c.l.b16 %v229
    %v493 = vunpack.c.l.b16 %v230
    %v494 = vunpack.c.l.b16 %v231
    %v495 = vunpack.c.l.b16 %v232
    %v496 = vunpack.c.l.b16 %v233
    %v497 = vunpack.c.l.b16 %v234
    %v498 = vunpack.c.l.b16 %v235
    %v499 = vunpack.c.l.b16 %v236
    %v500 = vunpack.c.l.b16 %v237
    %v501 = vunpack.c.l.b16 %v238
    %v502 = vunpack.c.l.b16 %v239
    %v503 = vunpack.c.l.b16 %v240
    %v504 = vunpack.c.l.b16 %v241
    %v505 = vunpack.c.l.b16 %v242
    %v506 = vunpack.c.l.b16 %v243
    %v507 = vunpack.c.l.b16 %v244
    %v508 = vunpack.c.l.b16 %v245
    %v509 = vunpack.c.l.b16 %v246
    %v510 = vunpack.c.l.b16 %v247
    %v511 = vunpack.c.l.b16 %v248
    %v512 = vunpack.c.l.b16 %v249
    %v513 = vunpack.c.l.b16 %v250
    %v514 = vunpack.c.l.b16 %v251
    %v515 = vunpack.c.l.b16 %v252
    %v516 = vunpack.c.l.b16 %v253
    %v517 = vunpack.c.l.b16 %v254
    %v518 = vunpack.c.l.b16 %v255
    %v519 = vunpack.c.l.b16 %v256
    %v520 = vunpack.c.l.b16 %v257
    %v521 = vunpack.c.l.b16 %v258
    %v522 = vunpack.c.l.b16 %v259
    %v523 = vunpack.c.l.b16 %v260
    %v524 = vunpack.c.l.b16 %v261
    %v525 = vunpack.c.l.b16 %v262
    %v526 = vunpack.c.l.b16 %v263
    %v527 = vunpack.c.l.b16 %v264
    %v528 = vunpack.c.l.b16 %v265
    %v529 = vunpack.c.l.b16 %v266
    %v530 = vunpack.c.l.b16 %v267
    %v531 = vunpack.c.l.b16 %v268
    %v532 = vunpack.c.l.b16 %v269
    %v533 = vunpack.c.l.b16 %v270
    %v534 = vunpack.c.l.b16 %v271
    %v535 = vunpack.c.l.b16 %v272
    %v536 = vunpack.c.l.b16 %v273
    %v537 = vunpack.c.l.b16 %v274
    %v538 = vunpack.c.l.b16 %v275
    %v539 = vunpack.c.l.b16 %v276
    %v540 = vunpack.c.l.b16 %v277
    %v541 = vunpack.c.l.b16 %v278
    %v542 = vunpack.c.l.b16 %v279
    %v543 = vunpack.c.l.b16 %v280
    %v544 = vunpack.c.l.b16 %v281
    %v545 = vunpack.c.l.b16 %v282
    %v546 = vunpack.c.l.b16 %v283
    %v547 = vunpack.c.l.b16 %v284
    %v548 = vunpack.c.l.b16 %v285
    %v549 = vunpack.c.l.b16 %v286
    %v550 = vunpack.c.l.b16 %v287
    %v551 = vunpack.c.l.b16 %v288
    %v552 = vunpack.c.l.b16 %v289
    %v553 = vunpack.c.l.b16 %v290
    %v554 = vunpack.c.l.b16 %v291
    %v555 = vunpack.c.l.b16 %v292
    %v556 = vunpack.c.l.b16 %v293
    %v557 = vunpack.c.l.b16 %v294
    %v558 = vunpack.c.l.b16 %v295
    %v559 = vunpack.c.l.b16 %v296
    %v560 = vunpack.c.l.b16 %v297
    %v561 = vunpack.c.l.b16 %v298
    %v562 = vunpack.c.l.b16 %v299
    %v563 = vunpack.c.l.b16 %v300
    %v564 = vunpack.c.l.b16 %v301
    %v565 = vunpack.c.l.b16 %v302
    %v566 = vunpack.c.l.b16 %v303
    %v567 = vunpack.c.l.b16 %v304
    %v568 = vunpack.c.l.b16 %v305
    %v569 = vunpack.c.l.b16 %v306
    %v570 = vunpack.c.l.b16 %v307
    %v571 = vunpack.c.l.b16 %v308
    %v572 = vunpack.c.l.b16 %v309
    %v573 = vunpack.c.l.b16 %v310
    %v574 = vunpack.c.l.b16 %v311
    %v575 = vunpack.c.l.b16 %v312
    %v576 = vunpack.c.l.b16 %v313
    %v577 = vunpack.c.l.b16 %v314
    %v578 = vpack.c.b16 %v451, %v450
    %v579 = vpack.c.b16 %v453, %v452
    %v580 = vpack.c.b16 %v455, %v454
    %v581 = vpack.c.b16 %v457, %v456
    %v582 = vpack.c.b16 %v459, %v458
    %v583 = vpack.c.b16 %v461, %v460
    %v584 = vpack.c.b16 %v463, %v462
    %v585 = vpack.c.b16 %v465, %v464
    %v586 = vpack.c.b16 %v467, %v466
    %v587 = vpack.c.b16 %v469, %v468
    %v588 = vpack.c.b16 %v471, %v470
    %v589 = vpack.c.b16 %v473, %v472
    %v590 = vpack.c.b16 %v475, %v474
    %v591 = vpack.c.b16 %v477, %v476
    %v592 = vpack.c.b16 %v479, %v478
    %v593 = vpack.c.b16 %v481, %v480
    %v594 = vpack.c.b16 %v483, %v482
    %v595 = vpack.c.b16 %v485, %v484
    %v596 = vpack.c.b16 %v487, %v486
    %v597 = vpack.c.b16 %v489, %v488
    %v598 = vpack.c.b16 %v491, %v490
    %v599 = vpack.c.b16 %v493, %v492
    %v600 = vpack.c.b16 %v495, %v494
    %v601 = vpack.c.b16 %v497, %v496
    %v602 = vpack.c.b16 %v499, %v498
    %v603 = vpack.c.b16 %v501, %v500
    %v604 = vpack.c.b16 %v503, %v502
    %v605 = vpack.c.b16 %v505, %v504
    %v606 = vpack.c.b16 %v507, %v506
    %v607 = vpack.c.b16 %v509, %v508
    %v608 = vpack.c.b16 %v511, %v510
    %v609 = vpack.c.b16 %v513, %v512
    %v610 = vpack.c.b16 %v515, %v514
    %v611 = vpack.c.b16 %v517, %v516
    %v612 = vpack.c.b16 %v519, %v518
    %v613 = vpack.c.b16 %v521, %v520
    %v614 = vpack.c.b16 %v523, %v522
    %v615 = vpack.c.b16 %v525, %v524
    %v616 = vpack.c.b16 %v527, %v526
    %v617 = vpack.c.b16 %v529, %v528
    %v618 = vpack.c.b16 %v531, %v530
    %v619 = vpack.c.b16 %v533, %v532
    %v620 = vpack.c.b16 %v535, %v534
    %v621 = vpack.c.b16 %v537, %v536
    %v622 = vpack.c.b16 %v539, %v538
    %v623 = vpack.c.b16 %v541, %v540
    %v624 = vpack.c.b16 %v543, %v542
    %v625 = vpack.c.b16 %v545, %v544
    %v626 = vpack.c.b16 %v547, %v546
    %v627 = vpack.c.b16 %v549, %v548
    %v628 = vpack.c.b16 %v551, %v550
    %v629 = vpack.c.b16 %v553, %v552
    %v630 = vpack.c.b16 %v555, %v554
    %v631 = vpack.c.b16 %v557, %v556
    %v632 = vpack.c.b16 %v559, %v558
    %v633 = vpack.c.b16 %v561, %v560
    %v634 = vpack.c.b16 %v563, %v562
    %v635 = vpack.c.b16 %v565, %v564
    %v636 = vpack.c.b16 %v567, %v566
    %v637 = vpack.c.b16 %v569, %v568
    %v638 = vpack.c.b16 %v571, %v570
    %v639 = vpack.c.b16 %v573, %v572
    %v640 = vpack.c.b16 %v575, %v574
    %v641 = vpack.c.b16 %v577, %v576
    %706 = vmatprep.subr.bf16.mxu0 0
    %707 = vmatpush1.bf16.msra.mxu0 %v578
    %708 = vmatprep.subr.bf16.mxu0 0
    %709 = vmatpush1.bf16.msra.mxu0 %v579
    %710 = vmatprep.subr.bf16.mxu0 0
    %711 = vmatpush1.bf16.msra.mxu0 %v580
    %712 = vmatprep.subr.bf16.mxu0 0
    %713 = vmatpush1.bf16.msra.mxu0 %v581
    %714 = vmatprep.subr.bf16.mxu0 0
    %715 = vmatpush1.bf16.msra.mxu0 %v582
    %716 = vmatprep.subr.bf16.mxu0 0
    %717 = vmatpush1.bf16.msra.mxu0 %v583
    %718 = vmatprep.subr.bf16.mxu0 0
    %719 = vmatpush1.bf16.msra.mxu0 %v584
    %720 = vmatprep.subr.bf16.mxu0 0
    %721 = vmatpush1.bf16.msra.mxu0 %v585
    %722 = vmatprep.subr.bf16.mxu0 0
    %723 = vmatpush1.bf16.msra.mxu0 %v586
    %724 = vmatprep.subr.bf16.mxu0 0
    %725 = vmatpush1.bf16.msra.mxu0 %v587
    %726 = vmatprep.subr.bf16.mxu0 0
    %727 = vmatpush1.bf16.msra.mxu0 %v588
    %728 = vmatprep.subr.bf16.mxu0 0
    %729 = vmatpush1.bf16.msra.mxu0 %v589
    %730 = vmatprep.subr.bf16.mxu0 0
    %731 = vmatpush1.bf16.msra.mxu0 %v590
    %732 = vmatprep.subr.bf16.mxu0 0
    %733 = vmatpush1.bf16.msra.mxu0 %v591
    %734 = vmatprep.subr.bf16.mxu0 0
    %735 = vmatpush1.bf16.msra.mxu0 %v592
    %736 = vmatprep.subr.bf16.mxu0 0
    %737 = vmatpush1.bf16.msra.mxu0 %v593
    %738 = vmatprep.mubr.bf16.mxu0 %v180
    %739 = vmatmul.mubr.bf16.gmra.mrb[0].mxu0 %v179
    %v740 = vpop.f32.mrb[0].mxu0
    %v741 = vadd.f32 %v320, %v740
    %v742 = vpop.f32.mrb[0].mxu0
    %v743 = vpop.f32.mrb[0].mxu0
    %v744 = vpop.f32.mrb[0].mxu0
    %745 = vdwg.mxu0
    %746 = vmatprep.subr.bf16.mxu0 0
    %747 = vmatpush1.bf16.msra.mxu0 %v594
    %748 = vmatprep.subr.bf16.mxu0 0
    %749 = vmatpush1.bf16.msra.mxu0 %v595
    %750 = vmatprep.subr.bf16.mxu0 0
    %751 = vmatpush1.bf16.msra.mxu0 %v596
    %752 = vmatprep.subr.bf16.mxu0 0
    %753 = vmatpush1.bf16.msra.mxu0 %v597
    %754 = vmatprep.subr.bf16.mxu0 0
    %755 = vmatpush1.bf16.msra.mxu0 %v598
    %756 = vmatprep.subr.bf16.mxu0 0
    %757 = vmatpush1.bf16.msra.mxu0 %v599
    %758 = vmatprep.subr.bf16.mxu0 0
    %759 = vmatpush1.bf16.msra.mxu0 %v600
    %760 = vmatprep.subr.bf16.mxu0 0
    %761 = vmatpush1.bf16.msra.mxu0 %v601
    %762 = vmatprep.subr.bf16.mxu0 0
    %763 = vmatpush1.bf16.msra.mxu0 %v602
    %764 = vmatprep.subr.bf16.mxu0 0
    %765 = vmatpush1.bf16.msra.mxu0 %v603
    %766 = vmatprep.subr.bf16.mxu0 0
    %767 = vmatpush1.bf16.msra.mxu0 %v604
    %768 = vmatprep.subr.bf16.mxu0 0
    %769 = vmatpush1.bf16.msra.mxu0 %v605
    %770 = vmatprep.subr.bf16.mxu0 0
    %771 = vmatpush1.bf16.msra.mxu0 %v606
    %772 = vmatprep.subr.bf16.mxu0 0
    %773 = vmatpush1.bf16.msra.mxu0 %v607
    %774 = vmatprep.subr.bf16.mxu0 0
    %775 = vmatpush1.bf16.msra.mxu0 %v608
    %776 = vmatprep.subr.bf16.mxu0 0
    %777 = vmatpush1.bf16.msra.mxu0 %v609
    %778 = vmatprep.mubr.bf16.mxu0 %v182
    %779 = vmatmul.mubr.bf16.gmra.mrb[0].mxu0 %v181
    %v780 = vpop.f32.mrb[0].mxu0
    %v781 = vadd.f32 %v741, %v780
    %v782 = vpop.f32.mrb[0].mxu0
    %v783 = vpop.f32.mrb[0].mxu0
    %v784 = vpop.f32.mrb[0].mxu0
    %785 = vdwg.mxu0
    %786 = vmatprep.subr.bf16.mxu0 0
    %787 = vmatpush1.bf16.msra.mxu0 %v610
    %788 = vmatprep.subr.bf16.mxu0 0
    %789 = vmatpush1.bf16.msra.mxu0 %v611
    %790 = vmatprep.subr.bf16.mxu0 0
    %791 = vmatpush1.bf16.msra.mxu0 %v612
    %792 = vmatprep.subr.bf16.mxu0 0
    %793 = vmatpush1.bf16.msra.mxu0 %v613
    %794 = vmatprep.subr.bf16.mxu0 0
    %795 = vmatpush1.bf16.msra.mxu0 %v614
    %796 = vmatprep.subr.bf16.mxu0 0
    %797 = vmatpush1.bf16.msra.mxu0 %v615
    %798 = vmatprep.subr.bf16.mxu0 0
    %799 = vmatpush1.bf16.msra.mxu0 %v616
    %800 = vmatprep.subr.bf16.mxu0 0
    %801 = vmatpush1.bf16.msra.mxu0 %v617
    %802 = vmatprep.subr.bf16.mxu0 0
    %803 = vmatpush1.bf16.msra.mxu0 %v618
    %804 = vmatprep.subr.bf16.mxu0 0
    %805 = vmatpush1.bf16.msra.mxu0 %v619
    %806 = vmatprep.subr.bf16.mxu0 0
    %807 = vmatpush1.bf16.msra.mxu0 %v620
    %808 = vmatprep.subr.bf16.mxu0 0
    %809 = vmatpush1.bf16.msra.mxu0 %v621
    %810 = vmatprep.subr.bf16.mxu0 0
    %811 = vmatpush1.bf16.msra.mxu0 %v622
    %812 = vmatprep.subr.bf16.mxu0 0
    %813 = vmatpush1.bf16.msra.mxu0 %v623
    %814 = vmatprep.subr.bf16.mxu0 0
    %815 = vmatpush1.bf16.msra.mxu0 %v624
    %816 = vmatprep.subr.bf16.mxu0 0
    %817 = vmatpush1.bf16.msra.mxu0 %v625
    %818 = vmatprep.mubr.bf16.mxu0 %v184
    %819 = vmatmul.mubr.bf16.gmra.mrb[0].mxu0 %v183
    %v820 = vpop.f32.mrb[0].mxu0
    %v821 = vadd.f32 %v781, %v820
    %v822 = vpop.f32.mrb[0].mxu0
    %v823 = vpop.f32.mrb[0].mxu0
    %v824 = vpop.f32.mrb[0].mxu0
    %825 = vdwg.mxu0
    %826 = vmatprep.subr.bf16.mxu0 0
    %827 = vmatpush1.bf16.msra.mxu0 %v626
    %828 = vmatprep.subr.bf16.mxu0 0
    %829 = vmatpush1.bf16.msra.mxu0 %v627
    %830 = vmatprep.subr.bf16.mxu0 0
    %831 = vmatpush1.bf16.msra.mxu0 %v628
    %832 = vmatprep.subr.bf16.mxu0 0
    %833 = vmatpush1.bf16.msra.mxu0 %v629
    %834 = vmatprep.subr.bf16.mxu0 0
    %835 = vmatpush1.bf16.msra.mxu0 %v630
    %836 = vmatprep.subr.bf16.mxu0 0
    %837 = vmatpush1.bf16.msra.mxu0 %v631
    %838 = vmatprep.subr.bf16.mxu0 0
    %839 = vmatpush1.bf16.msra.mxu0 %v632
    %840 = vmatprep.subr.bf16.mxu0 0
    %841 = vmatpush1.bf16.msra.mxu0 %v633
    %842 = vmatprep.subr.bf16.mxu0 0
    %843 = vmatpush1.bf16.msra.mxu0 %v634
    %844 = vmatprep.subr.bf16.mxu0 0
    %845 = vmatpush1.bf16.msra.mxu0 %v635
    %846 = vmatprep.subr.bf16.mxu0 0
    %847 = vmatpush1.bf16.msra.mxu0 %v636
    %848 = vmatprep.subr.bf16.mxu0 0
    %849 = vmatpush1.bf16.msra.mxu0 %v637
    %850 = vmatprep.subr.bf16.mxu0 0
    %851 = vmatpush1.bf16.msra.mxu0 %v638
    %852 = vmatprep.subr.bf16.mxu0 0
    %853 = vmatpush1.bf16.msra.mxu0 %v639
    %854 = vmatprep.subr.bf16.mxu0 0
    %855 = vmatpush1.bf16.msra.mxu0 %v640
    %856 = vmatprep.subr.bf16.mxu0 0
    %857 = vmatpush1.bf16.msra.mxu0 %v641
    %858 = vmatprep.mubr.bf16.mxu0 %v186
    %859 = vmatmul.mubr.bf16.gmra.mrb[0].mxu0 %v185
    %v860 = vpop.f32.mrb[0].mxu0
    %v861 = vadd.f32 %v821, %v860
    %v862 = vpop.f32.mrb[0].mxu0
    %v863 = vpop.f32.mrb[0].mxu0
    %v864 = vpop.f32.mrb[0].mxu0
    %865 = vdwg.mxu0
    %v866 = vmax.f32 %v861, 0.0
    %v867 = vpack.c.bf16 %v866, %v866
    %v868 = vld [vmem:[#allocation7] sm:$0xf]
    %v869 = vld [vmem:[#allocation7 + $0x4] sm:$0xf]
    %v870 = vld [vmem:[#allocation7 + $0x8] sm:$0xf]
    %v871 = vld [vmem:[#allocation7 + $0xc] sm:$0xf]
    %v872 = vld [vmem:[#allocation7 + $0x10] sm:$0xf]
    %v873 = vld [vmem:[#allocation7 + $0x14] sm:$0xf]
    %v874 = vld [vmem:[#allocation7 + $0x18] sm:$0xf]
    %v875 = vld [vmem:[#allocation7 + $0x1c] sm:$0xf]
    %v876 = vld [vmem:[#allocation7 + $0x20] sm:$0xf]
    %v877 = vld [vmem:[#allocation7 + $0x24] sm:$0xf]
    %v878 = vld [vmem:[#allocation7 + $0x28] sm:$0xf]
    %v879 = vld [vmem:[#allocation7 + $0x2c] sm:$0xf]
    %v880 = vld [vmem:[#allocation7 + $0x30] sm:$0xf]
    %v881 = vld [vmem:[#allocation7 + $0x34] sm:$0xf]
    %v882 = vld [vmem:[#allocation7 + $0x38] sm:$0xf]
    %v883 = vld [vmem:[#allocation7 + $0x3c] sm:$0xf]
    %v884 = vld [vmem:[%s4] sm:$0x1]
    %v886 = vlaneseq
    %v887 = vshrl.u32 %v886, 7
    %v888 = vsub.s32 0, %v887
    %v889 = vrot.slane %v884, %v888
    %v907 = vunpack.c.l.b16 %v868
    %v908 = vunpack.c.l.b16 %v869
    %v909 = vunpack.c.l.b16 %v870
    %v910 = vunpack.c.l.b16 %v871
    %v911 = vunpack.c.l.b16 %v872
    %v912 = vunpack.c.l.b16 %v873
    %v913 = vunpack.c.l.b16 %v874
    %v914 = vunpack.c.l.b16 %v875
    %v915 = vunpack.c.l.b16 %v876
    %v916 = vunpack.c.l.b16 %v877
    %v917 = vunpack.c.l.b16 %v878
    %v918 = vunpack.c.l.b16 %v879
    %v919 = vunpack.c.l.b16 %v880
    %v920 = vunpack.c.l.b16 %v881
    %v921 = vunpack.c.l.b16 %v882
    %v922 = vunpack.c.l.b16 %v883
    %v923 = vpack.c.b16 %v908, %v907
    %v924 = vpack.c.b16 %v910, %v909
    %v925 = vpack.c.b16 %v912, %v911
    %v926 = vpack.c.b16 %v914, %v913
    %v927 = vpack.c.b16 %v916, %v915
    %v928 = vpack.c.b16 %v918, %v917
    %v929 = vpack.c.b16 %v920, %v919
    %v930 = vpack.c.b16 %v922, %v921
    %939 = vmatprep.subr.bf16.mxu0 0
    %940 = vmatpush1.bf16.msra.mxu0 %v923
    %941 = vmatprep.subr.bf16.mxu0 0
    %942 = vmatpush1.bf16.msra.mxu0 %v924
    %943 = vmatprep.subr.bf16.mxu0 0
    %944 = vmatpush1.bf16.msra.mxu0 %v925
    %945 = vmatprep.subr.bf16.mxu0 0
    %946 = vmatpush1.bf16.msra.mxu0 %v926
    %947 = vmatprep.subr.bf16.mxu0 0
    %948 = vmatpush1.bf16.msra.mxu0 %v927
    %949 = vmatprep.subr.bf16.mxu0 0
    %950 = vmatpush1.bf16.msra.mxu0 %v928
    %951 = vmatprep.subr.bf16.mxu0 0
    %952 = vmatpush1.bf16.msra.mxu0 %v929
    %953 = vmatprep.subr.bf16.mxu0 0
    %954 = vmatpush1.bf16.msra.mxu0 %v930
    %955 = vmatprep.subr.bf16.mxu0 0
    %956 = vmatpush1.bf16.msra.mxu0 0
    %957 = vmatprep.subr.bf16.mxu0 0
    %958 = vmatpush1.bf16.msra.mxu0 0
    %959 = vmatprep.subr.bf16.mxu0 0
    %960 = vmatpush1.bf16.msra.mxu0 0
    %961 = vmatprep.subr.bf16.mxu0 0
    %962 = vmatpush1.bf16.msra.mxu0 0
    %963 = vmatprep.subr.bf16.mxu0 0
    %964 = vmatpush1.bf16.msra.mxu0 0
    %965 = vmatprep.subr.bf16.mxu0 0
    %966 = vmatpush1.bf16.msra.mxu0 0
    %967 = vmatprep.subr.bf16.mxu0 0
    %968 = vmatpush1.bf16.msra.mxu0 0
    %969 = vmatprep.subr.bf16.mxu0 0
    %970 = vmatpush1.bf16.msra.mxu0 0
    %971 = vmatprep.mubr.bf16.mxu0 0
    %972 = vmatmul.mubr.bf16.gmra.mrb[0].mxu0 %v867
    %v973 = vpop.f32.mrb[0].mxu0
    %v974 = vadd.f32 %v889, %v973
    %v975 = vpop.f32.mrb[0].mxu0
    %v976 = vpop.f32.mrb[0].mxu0
    %v977 = vpop.f32.mrb[0].mxu0
    %978 = vdwg.mxu0
    %v979 = vmax.f32 %v974, 0.0
    %v980 = vpack.c.bf16 %v979, %v979
    %v981 = vld [vmem:[#allocation8] sm:$0xff]
    %v982 = vld [vmem:[#allocation8 + $0x8] sm:$0xff]
    %v983 = vld [vmem:[#allocation8 + $0x10] sm:$0xff]
    %v984 = vld [vmem:[#allocation8 + $0x18] sm:$0xff]
    %v985 = vld [vmem:[#allocation8 + $0x20] sm:$0xff]
    %v986 = vld [vmem:[#allocation8 + $0x28] sm:$0xff]
    %v987 = vld [vmem:[#allocation8 + $0x30] sm:$0xff]
    %v988 = vld [vmem:[#allocation8 + $0x38] sm:$0xff]
    %v989 = vld [vmem:[#allocation8 + $0x40] sm:$0xff]
    %v990 = vld [vmem:[#allocation8 + $0x48] sm:$0xff]
    %v991 = vld [vmem:[#allocation8 + $0x50] sm:$0xff]
    %v992 = vld [vmem:[#allocation8 + $0x58] sm:$0xff]
    %v993 = vld [vmem:[#allocation8 + $0x60] sm:$0xff]
    %v994 = vld [vmem:[#allocation8 + $0x68] sm:$0xff]
    %v995 = vld [vmem:[#allocation8 + $0x70] sm:$0xff]
    %v996 = vld [vmem:[#allocation8 + $0x78] sm:$0xff]
    %v997 = vld [vmem:[#allocation8 + $0x80] sm:$0xff]
    %v998 = vld [vmem:[#allocation8 + $0x88] sm:$0xff]
    %v999 = vld [vmem:[#allocation8 + $0x90] sm:$0xff]
    %v1000 = vld [vmem:[#allocation8 + $0x98] sm:$0xff]
    %v1001 = vld [vmem:[#allocation8 + $0xa0] sm:$0xff]
    %v1002 = vld [vmem:[#allocation8 + $0xa8] sm:$0xff]
    %v1003 = vld [vmem:[#allocation8 + $0xb0] sm:$0xff]
    %v1004 = vld [vmem:[#allocation8 + $0xb8] sm:$0xff]
    %v1005 = vld [vmem:[#allocation8 + $0xc0] sm:$0xff]
    %v1006 = vld [vmem:[#allocation8 + $0xc8] sm:$0xff]
    %v1007 = vld [vmem:[#allocation8 + $0xd0] sm:$0xff]
    %v1008 = vld [vmem:[#allocation8 + $0xd8] sm:$0xff]
    %v1009 = vld [vmem:[#allocation8 + $0xe0] sm:$0xff]
    %v1010 = vld [vmem:[#allocation8 + $0xe8] sm:$0xff]
    %v1011 = vld [vmem:[#allocation8 + $0xf0] sm:$0xff]
    %v1012 = vld [vmem:[#allocation8 + $0xf8] sm:$0xff]
    %v1013 = vld [vmem:[#allocation8 + $0x100] sm:$0xff]
    %v1014 = vld [vmem:[#allocation8 + $0x108] sm:$0xff]
    %v1015 = vld [vmem:[#allocation8 + $0x110] sm:$0xff]
    %v1016 = vld [vmem:[#allocation8 + $0x118] sm:$0xff]
    %v1017 = vld [vmem:[#allocation8 + $0x120] sm:$0xff]
    %v1018 = vld [vmem:[#allocation8 + $0x128] sm:$0xff]
    %v1019 = vld [vmem:[#allocation8 + $0x130] sm:$0xff]
    %v1020 = vld [vmem:[#allocation8 + $0x138] sm:$0xff]
    %v1021 = vld [vmem:[#allocation8 + $0x140] sm:$0xff]
    %v1022 = vld [vmem:[#allocation8 + $0x148] sm:$0xff]
    %v1023 = vld [vmem:[#allocation8 + $0x150] sm:$0xff]
    %v1024 = vld [vmem:[#allocation8 + $0x158] sm:$0xff]
    %v1025 = vld [vmem:[#allocation8 + $0x160] sm:$0xff]
    %v1026 = vld [vmem:[#allocation8 + $0x168] sm:$0xff]
    %v1027 = vld [vmem:[#allocation8 + $0x170] sm:$0xff]
    %v1028 = vld [vmem:[#allocation8 + $0x178] sm:$0xff]
    %v1029 = vld [vmem:[#allocation8 + $0x180] sm:$0xff]
    %v1030 = vld [vmem:[#allocation8 + $0x188] sm:$0xff]
    %v1031 = vld [vmem:[#allocation8 + $0x190] sm:$0xff]
    %v1032 = vld [vmem:[#allocation8 + $0x198] sm:$0xff]
    %v1033 = vld [vmem:[#allocation8 + $0x1a0] sm:$0xff]
    %v1034 = vld [vmem:[#allocation8 + $0x1a8] sm:$0xff]
    %v1035 = vld [vmem:[#allocation8 + $0x1b0] sm:$0xff]
    %v1036 = vld [vmem:[#allocation8 + $0x1b8] sm:$0xff]
    %v1037 = vld [vmem:[#allocation8 + $0x1c0] sm:$0xff]
    %v1038 = vld [vmem:[#allocation8 + $0x1c8] sm:$0xff]
    %v1039 = vld [vmem:[#allocation8 + $0x1d0] sm:$0xff]
    %v1040 = vld [vmem:[#allocation8 + $0x1d8] sm:$0xff]
    %v1041 = vld [vmem:[#allocation8 + $0x1e0] sm:$0xff]
    %v1042 = vld [vmem:[#allocation8 + $0x1e8] sm:$0xff]
    %v1043 = vld [vmem:[#allocation8 + $0x1f0] sm:$0xff]
    %v1044 = vld [vmem:[#allocation8 + $0x1f8] sm:$0xff]
    %v1045 = vld [vmem:[%s6] sm:$0xff]
    %v1047 = vlaneseq
    %v1048 = vshrl.u32 %v1047, 7
    %v1049 = vsub.s32 0, %v1048
    %v1050 = vrot.slane %v1045, %v1049
    %v1051 = vlaneseq
    %v1052 = vshrl.u32 %v1051, 7
    %v1053 = vsub.s32 1, %v1052
    %v1054 = vrot.slane %v1045, %v1053
    %v1055 = vlaneseq
    %v1056 = vshrl.u32 %v1055, 7
    %v1057 = vsub.s32 2, %v1056
    %v1058 = vrot.slane %v1045, %v1057
    %v1059 = vlaneseq
    %v1060 = vshrl.u32 %v1059, 7
    %v1061 = vsub.s32 3, %v1060
    %v1062 = vrot.slane %v1045, %v1061
    %v1063 = vlaneseq
    %v1064 = vshrl.u32 %v1063, 7
    %v1065 = vsub.s32 4, %v1064
    %v1066 = vrot.slane %v1045, %v1065
    %v1067 = vlaneseq
    %v1068 = vshrl.u32 %v1067, 7
    %v1069 = vsub.s32 5, %v1068
    %v1070 = vrot.slane %v1045, %v1069
    %v1071 = vlaneseq
    %v1072 = vshrl.u32 %v1071, 7
    %v1073 = vsub.s32 6, %v1072
    %v1074 = vrot.slane %v1045, %v1073
    %v1075 = vlaneseq
    %v1076 = vshrl.u32 %v1075, 7
    %v1077 = vsub.s32 7, %v1076
    %v1078 = vrot.slane %v1045, %v1077
    %v1151 = vunpack.c.l.b16 %v981
    %v1152 = vunpack.c.h.b16 %v981
    %v1153 = vunpack.c.l.b16 %v982
    %v1154 = vunpack.c.h.b16 %v982
    %v1155 = vunpack.c.l.b16 %v983
    %v1156 = vunpack.c.h.b16 %v983
    %v1157 = vunpack.c.l.b16 %v984
    %v1158 = vunpack.c.h.b16 %v984
    %v1159 = vunpack.c.l.b16 %v985
    %v1160 = vunpack.c.h.b16 %v985
    %v1161 = vunpack.c.l.b16 %v986
    %v1162 = vunpack.c.h.b16 %v986
    %v1163 = vunpack.c.l.b16 %v987
    %v1164 = vunpack.c.h.b16 %v987
    %v1165 = vunpack.c.l.b16 %v988
    %v1166 = vunpack.c.h.b16 %v988
    %v1167 = vunpack.c.l.b16 %v989
    %v1168 = vunpack.c.h.b16 %v989
    %v1169 = vunpack.c.l.b16 %v990
    %v1170 = vunpack.c.h.b16 %v990
    %v1171 = vunpack.c.l.b16 %v991
    %v1172 = vunpack.c.h.b16 %v991
    %v1173 = vunpack.c.l.b16 %v992
    %v1174 = vunpack.c.h.b16 %v992
    %v1175 = vunpack.c.l.b16 %v993
    %v1176 = vunpack.c.h.b16 %v993
    %v1177 = vunpack.c.l.b16 %v994
    %v1178 = vunpack.c.h.b16 %v994
    %v1179 = vunpack.c.l.b16 %v995
    %v1180 = vunpack.c.h.b16 %v995
    %v1181 = vunpack.c.l.b16 %v996
    %v1182 = vunpack.c.h.b16 %v996
    %v1183 = vunpack.c.l.b16 %v997
    %v1184 = vunpack.c.h.b16 %v997
    %v1185 = vunpack.c.l.b16 %v998
    %v1186 = vunpack.c.h.b16 %v998
    %v1187 = vunpack.c.l.b16 %v999
    %v1188 = vunpack.c.h.b16 %v999
    %v1189 = vunpack.c.l.b16 %v1000
    %v1190 = vunpack.c.h.b16 %v1000
    %v1191 = vunpack.c.l.b16 %v1001
    %v1192 = vunpack.c.h.b16 %v1001
    %v1193 = vunpack.c.l.b16 %v1002
    %v1194 = vunpack.c.h.b16 %v1002
    %v1195 = vunpack.c.l.b16 %v1003
    %v1196 = vunpack.c.h.b16 %v1003
    %v1197 = vunpack.c.l.b16 %v1004
    %v1198 = vunpack.c.h.b16 %v1004
    %v1199 = vunpack.c.l.b16 %v1005
    %v1200 = vunpack.c.h.b16 %v1005
    %v1201 = vunpack.c.l.b16 %v1006
    %v1202 = vunpack.c.h.b16 %v1006
    %v1203 = vunpack.c.l.b16 %v1007
    %v1204 = vunpack.c.h.b16 %v1007
    %v1205 = vunpack.c.l.b16 %v1008
    %v1206 = vunpack.c.h.b16 %v1008
    %v1207 = vunpack.c.l.b16 %v1009
    %v1208 = vunpack.c.h.b16 %v1009
    %v1209 = vunpack.c.l.b16 %v1010
    %v1210 = vunpack.c.h.b16 %v1010
    %v1211 = vunpack.c.l.b16 %v1011
    %v1212 = vunpack.c.h.b16 %v1011
    %v1213 = vunpack.c.l.b16 %v1012
    %v1214 = vunpack.c.h.b16 %v1012
    %v1215 = vunpack.c.l.b16 %v1013
    %v1216 = vunpack.c.h.b16 %v1013
    %v1217 = vunpack.c.l.b16 %v1014
    %v1218 = vunpack.c.h.b16 %v1014
    %v1219 = vunpack.c.l.b16 %v1015
    %v1220 = vunpack.c.h.b16 %v1015
    %v1221 = vunpack.c.l.b16 %v1016
    %v1222 = vunpack.c.h.b16 %v1016
    %v1223 = vunpack.c.l.b16 %v1017
    %v1224 = vunpack.c.h.b16 %v1017
    %v1225 = vunpack.c.l.b16 %v1018
    %v1226 = vunpack.c.h.b16 %v1018
    %v1227 = vunpack.c.l.b16 %v1019
    %v1228 = vunpack.c.h.b16 %v1019
    %v1229 = vunpack.c.l.b16 %v1020
    %v1230 = vunpack.c.h.b16 %v1020
    %v1231 = vunpack.c.l.b16 %v1021
    %v1232 = vunpack.c.h.b16 %v1021
    %v1233 = vunpack.c.l.b16 %v1022
    %v1234 = vunpack.c.h.b16 %v1022
    %v1235 = vunpack.c.l.b16 %v1023
    %v1236 = vunpack.c.h.b16 %v1023
    %v1237 = vunpack.c.l.b16 %v1024
    %v1238 = vunpack.c.h.b16 %v1024
    %v1239 = vunpack.c.l.b16 %v1025
    %v1240 = vunpack.c.h.b16 %v1025
    %v1241 = vunpack.c.l.b16 %v1026
    %v1242 = vunpack.c.h.b16 %v1026
    %v1243 = vunpack.c.l.b16 %v1027
    %v1244 = vunpack.c.h.b16 %v1027
    %v1245 = vunpack.c.l.b16 %v1028
    %v1246 = vunpack.c.h.b16 %v1028
    %v1247 = vunpack.c.l.b16 %v1029
    %v1248 = vunpack.c.h.b16 %v1029
    %v1249 = vunpack.c.l.b16 %v1030
    %v1250 = vunpack.c.h.b16 %v1030
    %v1251 = vunpack.c.l.b16 %v1031
    %v1252 = vunpack.c.h.b16 %v1031
    %v1253 = vunpack.c.l.b16 %v1032
    %v1254 = vunpack.c.h.b16 %v1032
    %v1255 = vunpack.c.l.b16 %v1033
    %v1256 = vunpack.c.h.b16 %v1033
    %v1257 = vunpack.c.l.b16 %v1034
    %v1258 = vunpack.c.h.b16 %v1034
    %v1259 = vunpack.c.l.b16 %v1035
    %v1260 = vunpack.c.h.b16 %v1035
    %v1261 = vunpack.c.l.b16 %v1036
    %v1262 = vunpack.c.h.b16 %v1036
    %v1263 = vunpack.c.l.b16 %v1037
    %v1264 = vunpack.c.h.b16 %v1037
    %v1265 = vunpack.c.l.b16 %v1038
    %v1266 = vunpack.c.h.b16 %v1038
    %v1267 = vunpack.c.l.b16 %v1039
    %v1268 = vunpack.c.h.b16 %v1039
    %v1269 = vunpack.c.l.b16 %v1040
    %v1270 = vunpack.c.h.b16 %v1040
    %v1271 = vunpack.c.l.b16 %v1041
    %v1272 = vunpack.c.h.b16 %v1041
    %v1273 = vunpack.c.l.b16 %v1042
    %v1274 = vunpack.c.h.b16 %v1042
    %v1275 = vunpack.c.l.b16 %v1043
    %v1276 = vunpack.c.h.b16 %v1043
    %v1277 = vunpack.c.l.b16 %v1044
    %v1278 = vunpack.c.h.b16 %v1044
    %v1279 = vpack.c.b16 %v1159, %v1151
    %v1280 = vpack.c.b16 %v1160, %v1152
    %v1281 = vpack.c.b16 %v1161, %v1153
    %v1282 = vpack.c.b16 %v1162, %v1154
    %v1283 = vpack.c.b16 %v1163, %v1155
    %v1284 = vpack.c.b16 %v1164, %v1156
    %v1285 = vpack.c.b16 %v1165, %v1157
    %v1286 = vpack.c.b16 %v1166, %v1158
    %v1287 = vpack.c.b16 %v1175, %v1167
    %v1288 = vpack.c.b16 %v1176, %v1168
    %v1289 = vpack.c.b16 %v1177, %v1169
    %v1290 = vpack.c.b16 %v1178, %v1170
    %v1291 = vpack.c.b16 %v1179, %v1171
    %v1292 = vpack.c.b16 %v1180, %v1172
    %v1293 = vpack.c.b16 %v1181, %v1173
    %v1294 = vpack.c.b16 %v1182, %v1174
    %v1295 = vpack.c.b16 %v1191, %v1183
    %v1296 = vpack.c.b16 %v1192, %v1184
    %v1297 = vpack.c.b16 %v1193, %v1185
    %v1298 = vpack.c.b16 %v1194, %v1186
    %v1299 = vpack.c.b16 %v1195, %v1187
    %v1300 = vpack.c.b16 %v1196, %v1188
    %v1301 = vpack.c.b16 %v1197, %v1189
    %v1302 = vpack.c.b16 %v1198, %v1190
    %v1303 = vpack.c.b16 %v1207, %v1199
    %v1304 = vpack.c.b16 %v1208, %v1200
    %v1305 = vpack.c.b16 %v1209, %v1201
    %v1306 = vpack.c.b16 %v1210, %v1202
    %v1307 = vpack.c.b16 %v1211, %v1203
    %v1308 = vpack.c.b16 %v1212, %v1204
    %v1309 = vpack.c.b16 %v1213, %v1205
    %v1310 = vpack.c.b16 %v1214, %v1206
    %v1311 = vpack.c.b16 %v1223, %v1215
    %v1312 = vpack.c.b16 %v1224, %v1216
    %v1313 = vpack.c.b16 %v1225, %v1217
    %v1314 = vpack.c.b16 %v1226, %v1218
    %v1315 = vpack.c.b16 %v1227, %v1219
    %v1316 = vpack.c.b16 %v1228, %v1220
    %v1317 = vpack.c.b16 %v1229, %v1221
    %v1318 = vpack.c.b16 %v1230, %v1222
    %v1319 = vpack.c.b16 %v1239, %v1231
    %v1320 = vpack.c.b16 %v1240, %v1232
    %v1321 = vpack.c.b16 %v1241, %v1233
    %v1322 = vpack.c.b16 %v1242, %v1234
    %v1323 = vpack.c.b16 %v1243, %v1235
    %v1324 = vpack.c.b16 %v1244, %v1236
    %v1325 = vpack.c.b16 %v1245, %v1237
    %v1326 = vpack.c.b16 %v1246, %v1238
    %v1327 = vpack.c.b16 %v1255, %v1247
    %v1328 = vpack.c.b16 %v1256, %v1248
    %v1329 = vpack.c.b16 %v1257, %v1249
    %v1330 = vpack.c.b16 %v1258, %v1250
    %v1331 = vpack.c.b16 %v1259, %v1251
    %v1332 = vpack.c.b16 %v1260, %v1252
    %v1333 = vpack.c.b16 %v1261, %v1253
    %v1334 = vpack.c.b16 %v1262, %v1254
    %v1335 = vpack.c.b16 %v1271, %v1263
    %v1336 = vpack.c.b16 %v1272, %v1264
    %v1337 = vpack.c.b16 %v1273, %v1265
    %v1338 = vpack.c.b16 %v1274, %v1266
    %v1339 = vpack.c.b16 %v1275, %v1267
    %v1340 = vpack.c.b16 %v1276, %v1268
    %v1341 = vpack.c.b16 %v1277, %v1269
    %v1342 = vpack.c.b16 %v1278, %v1270
    %1407 = vmatprep.subr.bf16.mxu0 %v1280
    %1408 = vmatpush1.bf16.msra.mxu0 %v1279
    %1409 = vmatprep.subr.bf16.mxu0 %v1288
    %1410 = vmatpush1.bf16.msra.mxu0 %v1287
    %1411 = vmatprep.subr.bf16.mxu0 %v1296
    %1412 = vmatpush1.bf16.msra.mxu0 %v1295
    %1413 = vmatprep.subr.bf16.mxu0 %v1304
    %1414 = vmatpush1.bf16.msra.mxu0 %v1303
    %1415 = vmatprep.subr.bf16.mxu0 %v1312
    %1416 = vmatpush1.bf16.msra.mxu0 %v1311
    %1417 = vmatprep.subr.bf16.mxu0 %v1320
    %1418 = vmatpush1.bf16.msra.mxu0 %v1319
    %1419 = vmatprep.subr.bf16.mxu0 %v1328
    %1420 = vmatpush1.bf16.msra.mxu0 %v1327
    %1421 = vmatprep.subr.bf16.mxu0 %v1336
    %1422 = vmatpush1.bf16.msra.mxu0 %v1335
    %1423 = vmatprep.subr.bf16.mxu0 0
    %1424 = vmatpush1.bf16.msra.mxu0 0
    %1425 = vmatprep.subr.bf16.mxu0 0
    %1426 = vmatpush1.bf16.msra.mxu0 0
    %1427 = vmatprep.subr.bf16.mxu0 0
    %1428 = vmatpush1.bf16.msra.mxu0 0
    %1429 = vmatprep.subr.bf16.mxu0 0
    %1430 = vmatpush1.bf16.msra.mxu0 0
    %1431 = vmatprep.subr.bf16.mxu0 0
    %1432 = vmatpush1.bf16.msra.mxu0 0
    %1433 = vmatprep.subr.bf16.mxu0 0
    %1434 = vmatpush1.bf16.msra.mxu0 0
    %1435 = vmatprep.subr.bf16.mxu0 0
    %1436 = vmatpush1.bf16.msra.mxu0 0
    %1437 = vmatprep.subr.bf16.mxu0 0
    %1438 = vmatpush1.bf16.msra.mxu0 0
    %1439 = vmatprep.mubr.bf16.mxu0 0
    %1440 = vmatmul.mubr.bf16.gmra.mrb[0].mxu0 %v980
    %v1441 = vpop.f32.mrb[0].mxu0
    %v1442 = vadd.f32 %v1050, %v1441
    %v1443 = vpop.f32.mrb[0].mxu0
    %v1444 = vadd.f32 %v1054, %v1443
    %v1445 = vpop.f32.mrb[0].mxu0
    %v1446 = vpop.f32.mrb[0].mxu0
    %1447 = vdwg.mxu0
    %1448 = vmatprep.subr.bf16.mxu0 %v1282
    %1449 = vmatpush1.bf16.msra.mxu0 %v1281
    %1450 = vmatprep.subr.bf16.mxu0 %v1290
    %1451 = vmatpush1.bf16.msra.mxu0 %v1289
    %1452 = vmatprep.subr.bf16.mxu0 %v1298
    %1453 = vmatpush1.bf16.msra.mxu0 %v1297
    %1454 = vmatprep.subr.bf16.mxu0 %v1306
    %1455 = vmatpush1.bf16.msra.mxu0 %v1305
    %1456 = vmatprep.subr.bf16.mxu0 %v1314
    %1457 = vmatpush1.bf16.msra.mxu0 %v1313
    %1458 = vmatprep.subr.bf16.mxu0 %v1322
    %1459 = vmatpush1.bf16.msra.mxu0 %v1321
    %1460 = vmatprep.subr.bf16.mxu0 %v1330
    %1461 = vmatpush1.bf16.msra.mxu0 %v1329
    %1462 = vmatprep.subr.bf16.mxu0 %v1338
    %1463 = vmatpush1.bf16.msra.mxu0 %v1337
    %1464 = vmatprep.subr.bf16.mxu0 0
    %1465 = vmatpush1.bf16.msra.mxu0 0
    %1466 = vmatprep.subr.bf16.mxu0 0
    %1467 = vmatpush1.bf16.msra.mxu0 0
    %1468 = vmatprep.subr.bf16.mxu0 0
    %1469 = vmatpush1.bf16.msra.mxu0 0
    %1470 = vmatprep.subr.bf16.mxu0 0
    %1471 = vmatpush1.bf16.msra.mxu0 0
    %1472 = vmatprep.subr.bf16.mxu0 0
    %1473 = vmatpush1.bf16.msra.mxu0 0
    %1474 = vmatprep.subr.bf16.mxu0 0
    %1475 = vmatpush1.bf16.msra.mxu0 0
    %1476 = vmatprep.subr.bf16.mxu0 0
    %1477 = vmatpush1.bf16.msra.mxu0 0
    %1478 = vmatprep.subr.bf16.mxu0 0
    %1479 = vmatpush1.bf16.msra.mxu0 0
    %1480 = vmatprep.mubr.bf16.mxu0 0
    %1481 = vmatmul.mubr.bf16.gmra.mrb[0].mxu0 %v980
    %v1482 = vpop.f32.mrb[0].mxu0
    %v1483 = vadd.f32 %v1058, %v1482
    %v1484 = vpop.f32.mrb[0].mxu0
    %v1485 = vadd.f32 %v1062, %v1484
    %v1486 = vpop.f32.mrb[0].mxu0
    %v1487 = vpop.f32.mrb[0].mxu0
    %1488 = vdwg.mxu0
    %1489 = vmatprep.subr.bf16.mxu0 %v1284
    %1490 = vmatpush1.bf16.msra.mxu0 %v1283
    %1491 = vmatprep.subr.bf16.mxu0 %v1292
    %1492 = vmatpush1.bf16.msra.mxu0 %v1291
    %1493 = vmatprep.subr.bf16.mxu0 %v1300
    %1494 = vmatpush1.bf16.msra.mxu0 %v1299
    %1495 = vmatprep.subr.bf16.mxu0 %v1308
    %1496 = vmatpush1.bf16.msra.mxu0 %v1307
    %1497 = vmatprep.subr.bf16.mxu0 %v1316
    %1498 = vmatpush1.bf16.msra.mxu0 %v1315
    %1499 = vmatprep.subr.bf16.mxu0 %v1324
    %1500 = vmatpush1.bf16.msra.mxu0 %v1323
    %1501 = vmatprep.subr.bf16.mxu0 %v1332
    %1502 = vmatpush1.bf16.msra.mxu0 %v1331
    %1503 = vmatprep.subr.bf16.mxu0 %v1340
    %1504 = vmatpush1.bf16.msra.mxu0 %v1339
    %1505 = vmatprep.subr.bf16.mxu0 0
    %1506 = vmatpush1.bf16.msra.mxu0 0
    %1507 = vmatprep.subr.bf16.mxu0 0
    %1508 = vmatpush1.bf16.msra.mxu0 0
    %1509 = vmatprep.subr.bf16.mxu0 0
    %1510 = vmatpush1.bf16.msra.mxu0 0
    %1511 = vmatprep.subr.bf16.mxu0 0
    %1512 = vmatpush1.bf16.msra.mxu0 0
    %1513 = vmatprep.subr.bf16.mxu0 0
    %1514 = vmatpush1.bf16.msra.mxu0 0
    %1515 = vmatprep.subr.bf16.mxu0 0
    %1516 = vmatpush1.bf16.msra.mxu0 0
    %1517 = vmatprep.subr.bf16.mxu0 0
    %1518 = vmatpush1.bf16.msra.mxu0 0
    %1519 = vmatprep.subr.bf16.mxu0 0
    %1520 = vmatpush1.bf16.msra.mxu0 0
    %1521 = vmatprep.mubr.bf16.mxu0 0
    %1522 = vmatmul.mubr.bf16.gmra.mrb[0].mxu0 %v980
    %v1523 = vpop.f32.mrb[0].mxu0
    %v1524 = vadd.f32 %v1066, %v1523
    %v1525 = vpop.f32.mrb[0].mxu0
    %v1526 = vadd.f32 %v1070, %v1525
    %v1527 = vpop.f32.mrb[0].mxu0
    %v1528 = vpop.f32.mrb[0].mxu0
    %1529 = vdwg.mxu0
    %1530 = vmatprep.subr.bf16.mxu0 %v1286
    %1531 = vmatpush1.bf16.msra.mxu0 %v1285
    %1532 = vmatprep.subr.bf16.mxu0 %v1294
    %1533 = vmatpush1.bf16.msra.mxu0 %v1293
    %1534 = vmatprep.subr.bf16.mxu0 %v1302
    %1535 = vmatpush1.bf16.msra.mxu0 %v1301
    %1536 = vmatprep.subr.bf16.mxu0 %v1310
    %1537 = vmatpush1.bf16.msra.mxu0 %v1309
    %1538 = vmatprep.subr.bf16.mxu0 %v1318
    %1539 = vmatpush1.bf16.msra.mxu0 %v1317
    %1540 = vmatprep.subr.bf16.mxu0 %v1326
    %1541 = vmatpush1.bf16.msra.mxu0 %v1325
    %1542 = vmatprep.subr.bf16.mxu0 %v1334
    %1543 = vmatpush1.bf16.msra.mxu0 %v1333
    %1544 = vmatprep.subr.bf16.mxu0 %v1342
    %1545 = vmatpush1.bf16.msra.mxu0 %v1341
    %1546 = vmatprep.subr.bf16.mxu0 0
    %1547 = vmatpush1.bf16.msra.mxu0 0
    %1548 = vmatprep.subr.bf16.mxu0 0
    %1549 = vmatpush1.bf16.msra.mxu0 0
    %1550 = vmatprep.subr.bf16.mxu0 0
    %1551 = vmatpush1.bf16.msra.mxu0 0
    %1552 = vmatprep.subr.bf16.mxu0 0
    %1553 = vmatpush1.bf16.msra.mxu0 0
    %1554 = vmatprep.subr.bf16.mxu0 0
    %1555 = vmatpush1.bf16.msra.mxu0 0
    %1556 = vmatprep.subr.bf16.mxu0 0
    %1557 = vmatpush1.bf16.msra.mxu0 0
    %1558 = vmatprep.subr.bf16.mxu0 0
    %1559 = vmatpush1.bf16.msra.mxu0 0
    %1560 = vmatprep.subr.bf16.mxu0 0
    %1561 = vmatpush1.bf16.msra.mxu0 0
    %1562 = vmatprep.mubr.bf16.mxu0 0
    %1563 = vmatmul.mubr.bf16.gmra.mrb[0].mxu0 %v980
    %v1564 = vpop.f32.mrb[0].mxu0
    %v1565 = vadd.f32 %v1074, %v1564
    %v1566 = vpop.f32.mrb[0].mxu0
    %v1567 = vadd.f32 %v1078, %v1566
    %v1568 = vpop.f32.mrb[0].mxu0
    %v1569 = vpop.f32.mrb[0].mxu0
    %1570 = vdwg.mxu0
    %v1579 = vcombine.low %v1442, %v1444
    %v1580 = vcombine.high %v1442, %v1444
    %v1581 = vcombine.low %v1483, %v1485
    %v1582 = vcombine.high %v1483, %v1485
    %v1584 = vunpack.c.l.s4 1983009808
    %v1585 = vunpack.c.0.s8 %v1584
    %v1586 = vlaneseq
    %v1587 = vshrl.u32 %v1586, 7
    %v1588 = vsub.s32 %v1585, %v1587
    %v1589 = vrot.slane %v1579, %v1588
    %v1591 = vunpack.c.l.s4 1983009808
    %v1592 = vunpack.c.0.s8 %v1591
    %v1593 = vlaneseq
    %v1594 = vshrl.u32 %v1593, 7
    %v1595 = vsub.s32 %v1592, %v1594
    %v1596 = vrot.slane %v1580, %v1595
    %v1598 = vunpack.c.l.s4 1983009808
    %v1599 = vunpack.c.0.s8 %v1598
    %v1600 = vlaneseq
    %v1601 = vshrl.u32 %v1600, 7
    %v1602 = vsub.s32 %v1599, %v1601
    %v1603 = vrot.slane %v1581, %v1602
    %v1605 = vunpack.c.l.s4 1983009808
    %v1606 = vunpack.c.0.s8 %v1605
    %v1607 = vlaneseq
    %v1608 = vshrl.u32 %v1607, 7
    %v1609 = vsub.s32 %v1606, %v1608
    %v1610 = vrot.slane %v1582, %v1609
    %v1611 = vcombine.low %v1589, %v1603
    %v1612 = vcombine.high %v1589, %v1603
    %v1613 = vcombine.low %v1596, %v1610
    %v1614 = vcombine.high %v1596, %v1610
    %v1615 = vcombine.low %v1524, %v1526
    %v1616 = vcombine.high %v1524, %v1526
    %v1617 = vcombine.low %v1565, %v1567
    %v1618 = vcombine.high %v1565, %v1567
    %v1620 = vunpack.c.l.s4 1983009808
    %v1621 = vunpack.c.0.s8 %v1620
    %v1622 = vlaneseq
    %v1623 = vshrl.u32 %v1622, 7
    %v1624 = vsub.s32 %v1621, %v1623
    %v1625 = vrot.slane %v1615, %v1624
    %v1627 = vunpack.c.l.s4 1983009808
    %v1628 = vunpack.c.0.s8 %v1627
    %v1629 = vlaneseq
    %v1630 = vshrl.u32 %v1629, 7
    %v1631 = vsub.s32 %v1628, %v1630
    %v1632 = vrot.slane %v1616, %v1631
    %v1634 = vunpack.c.l.s4 1983009808
    %v1635 = vunpack.c.0.s8 %v1634
    %v1636 = vlaneseq
    %v1637 = vshrl.u32 %v1636, 7
    %v1638 = vsub.s32 %v1635, %v1637
    %v1639 = vrot.slane %v1617, %v1638
    %v1641 = vunpack.c.l.s4 1983009808
    %v1642 = vunpack.c.0.s8 %v1641
    %v1643 = vlaneseq
    %v1644 = vshrl.u32 %v1643, 7
    %v1645 = vsub.s32 %v1642, %v1644
    %v1646 = vrot.slane %v1618, %v1645
    %v1647 = vcombine.low %v1625, %v1639
    %v1648 = vcombine.high %v1625, %v1639
    %v1649 = vcombine.low %v1632, %v1646
    %v1650 = vcombine.high %v1632, %v1646
    %1659 = vst [vmem:[#allocation10] sm:$0xff] %v1611
    %1660 = vst [vmem:[#allocation10 + $0x8] sm:$0xff] %v1647
    %1661 = vst [vmem:[#allocation10 + $0x10] sm:$0xff] %v1612
    %1662 = vst [vmem:[#allocation10 + $0x18] sm:$0xff] %v1648
    %1663 = vst [vmem:[#allocation10 + $0x20] sm:$0xff] %v1613
    %1664 = vst [vmem:[#allocation10 + $0x28] sm:$0xff] %v1649
    %1665 = vst [vmem:[#allocation10 + $0x30] sm:$0xff] %v1614
    %1666 = vst [vmem:[#allocation10 + $0x38] sm:$0xff] %v1650
    // Predicated region
    $region46: #{tpu_custom_call.1} parent=1 // pred_check
      _
    $region47: #{tpu_custom_call.1} parent=1 // pred_check_branch
      %1668 = sbr.rel (0) target = $region49
    $region48: #{tpu_custom_call.1} parent=1 // pred_region
      %s1670 = ssub.s32 1024, 256
      %1671 = vsyncadd [#allocation4], %s1670
      %s1672 = sshll.u32 [#allocation10], 4
      %s1673 = int_to_ptr.vmem [resolvable:$true] %s1672
      %1678 = dma.vmem_to_hbm [thread:$0]  %s1673, 256, %s7, [#allocation4], 256, 256, 16
    $region49: #{tpu_custom_call.1} parent=1 // pred_fallthru
      _
    // Predicated region
    $region50: #{tpu_custom_call.1} parent=1 // pred_check
      _
    $region51: #{tpu_custom_call.1} parent=1 // pred_check_branch
      %1680 = sbr.rel (0) target = $region53
    $region52: #{tpu_custom_call.1} parent=1 // pred_region
      %1681 = dma.done [#allocation4], 1024
    $region53: #{tpu_custom_call.1} parent=1 // pred_fallthru
      _
    %1682 = vsyncpa [#allocation3], 1
    %1683 = vsyncpa [#allocation6], 1
    %1684 = vsyncpa [#allocation9], 1
    %1685 = vsyncpa [#allocation4], 1

</llo_original>
